<compile_context>
chip_gen: v7x
topology: tpu7x:2x2x1
jax: 0.10.0
libtpu: 0.0.40
codegen_flags: <defaults>
</compile_context>

<pallas_src>
import jax
import jax.numpy as jnp
from jax import lax
from jax.experimental import pallas as pl
from jax.experimental.pallas import tpu as pltpu


_VMEM_BUDGET = 36 * 1024 * 1024   # target footprint of all pipelined blocks
_VMEM_CAP = 48 * 1024 * 1024      # never request more scoped VMEM than this (v7x headroom)


def _round_up(a: int, b: int) -> int:
    return ((a + b - 1) // b) * b


def _sublane_min(dtype) -> int:
    """Minimum sublane tile for the second-to-last dim, by dtype packing."""
    itemsize = jnp.dtype(dtype).itemsize
    if itemsize == 2:       # bf16 / fp16
        return 16
    if itemsize == 1:       # int8 / fp8
        return 32
    return 8                # float32


def _plan_tiles(T: int, H: int, itemsize: int, sub: int, force: str = "auto"):
    """Pick a tiling plan that fits the VMEM budget.

    Returns a dict with kind == "fullk" (tk = H_pad, no reduction axis) or
    kind == "stream" (3-D grid with f32 accumulator, >= 2 K steps).
    """
    cap = _round_up(max(T, 1), sub)

    def rnd_tm(v):
        return max(sub, _round_up(min(v, cap), sub))

    tm_opts = list(dict.fromkeys((rnd_tm(1024), rnd_tm(512), rnd_tm(256))))

    # ---------------- full-K strip path ----------------
    H_pad = _round_up(H, 128)
    if force != "stream":
        tn_opts = []
        if H_pad <= 2048:
            tn_opts.append(H_pad)            # whole-N weight strip (read x once)
        for v in (1024, 512, 256):
            if v < H_pad and H_pad % v == 0:
                tn_opts.append(v)

        def fullk_bytes(tm, tn):
            # double-buffered x, w, bias, out blocks
            return itemsize * (2 * tm * H_pad + 2 * tn * H_pad + 2 * tm * tn + 2 * tn)

        # Bigger tn first: x HBM re-reads scale as H_pad / tn.
        for tn in tn_opts:
            for tm in tm_opts:
                fb = fullk_bytes(tm, tn)
                if fb <= _VMEM_BUDGET:
                    return dict(kind="fullk", tm=tm, tn=tn, H_pad=H_pad, vmem=fb)
        if force == "fullk":
            raise ValueError("full-K plan does not fit the VMEM budget")

    # ---------------- streaming (K-tiled) path ----------------
    H_pad = _round_up(H, 256)   # keep N/K tiles >= 256 wide (MXU-friendly)

    def stream_bytes(tm, tn, tk):
        # double-buffered x, w, bias, out blocks + single f32 accumulator
        return (itemsize * (2 * tm * tk + 2 * tn * tk + 2 * tm * tn + 2 * tn)
                + 4 * tm * tn)

    for tm in list(dict.fromkeys(tm_opts + [rnd_tm(128), rnd_tm(sub)])):
        for tn in (512, 256):
            if H_pad % tn:
                continue
            for tk in (1024, 512, 256):
                if tk >= H_pad or H_pad % tk:   # need >= 2 K steps
                    continue
                sb = stream_bytes(tm, tn, tk)
                if sb <= _VMEM_BUDGET:
                    return dict(kind="stream", tm=tm, tn=tn, tk=tk,
                                H_pad=H_pad, vmem=sb)

    raise ValueError("no tiling fits the VMEM budget")


# --------------------------------------------------------------------------
# Kernels
# --------------------------------------------------------------------------
def _fc_fullk_kernel(x_ref, w_ref, b_ref, o_ref):
    """One (tm, tn) output tile, full K depth in a single MXU contraction.

    x_ref: (tm, H)  w_ref: (tn, H) in PyTorch (out, in) layout
    b_ref: (1, tn)  o_ref: (tm, tn)
    """
    y = lax.dot_general(
        x_ref[...], w_ref[...],
        dimension_numbers=(((1,), (1,)), ((), ())),   # NT: contract K with "in"
        preferred_element_type=jnp.float32)
    y = y + b_ref[...].astype(jnp.float32)
    o_ref[...] = jnp.maximum(y, 0.0).astype(o_ref.dtype)   # ReLU; dropout = id (eval)


def _fc_stream_kernel(x_ref, w_ref, b_ref, o_ref, acc_ref):
    """K-tiled variant with an f32 VMEM accumulator (requires >= 2 K steps).

    x_ref: (tm, tk)  w_ref: (tn, tk)  b_ref: (1, tn)
    o_ref: (tm, tn)  acc_ref: (tm, tn) f32 scratch
    """
    k = pl.program_id(2)
    nk = pl.num_programs(2)

    part = lax.dot_general(
        x_ref[...], w_ref[...],
        dimension_numbers=(((1,), (1,)), ((), ())),
        preferred_element_type=jnp.float32)

    @pl.when(k == 0)
    def _():
        acc_ref[...] = part                     # no zero-init pass

    @pl.when(jnp.logical_and(k > 0, k < nk - 1))
    def _():
        acc_ref[...] = acc_ref[...] + part

    @pl.when(k == nk - 1)
    def _():
        y = acc_ref[...] + part + b_ref[...].astype(jnp.float32)
        o_ref[...] = jnp.maximum(y, 0.0).astype(o_ref.dtype)


# --------------------------------------------------------------------------
# Wrapper
# --------------------------------------------------------------------------
def fc_hidden_linear(hidden_states, weight, bias, *, force: str = "auto"):
    """relu(dropout_eval(hidden_states @ weight.T + bias)).

    hidden_states: (..., H); weight: (H, H) in PyTorch (out, in) layout;
    bias: (H,).  Arbitrary leading dims / token counts supported (padded
    internally only when necessary).  `force` in {"auto", "fullk", "stream"}
    selects the tiling strategy (auto picks full-K strips whenever they fit).
    """
    orig_shape = hidden_states.shape
    H = orig_shape[-1]
    x2d = hidden_states.reshape(-1, H)
    T = x2d.shape[0]
    dtype = x2d.dtype
    itemsize = jnp.dtype(dtype).itemsize
    sub = _sublane_min(dtype)

    plan = _plan_tiles(T, H, itemsize, sub, force=force)
    H_pad = plan["H_pad"]

    if plan["kind"] == "fullk":
        tm, tn = plan["tm"], plan["tn"]
        # v7x has 2 TensorCores: guarantee >= 2 parallel blocks when possible.
        if (_round_up(T, tm) // tm) * (H_pad // tn) < 2:
            if tm % (2 * sub) == 0:
                tm //= 2
            elif tn % 256 == 0:
                tn //= 2
        T_pad = _round_up(T, tm)
    else:
        tm, tn, tk = plan["tm"], plan["tn"], plan["tk"]
        T_pad = _round_up(T, tm)

    # --- pad only when needed (avoids an extra HBM pass over the activation) ---
    if T_pad != T or H_pad != H:
        x2d = jnp.pad(x2d, ((0, T_pad - T), (0, H_pad - H)))
    w = weight
    b = bias
    if H_pad != H:
        w = jnp.pad(weight, ((0, H_pad - H), (0, H_pad - H)))
        b = jnp.pad(bias, ((0, H_pad - H),))
    b2d = b.reshape(1, H_pad)

    vmem_limit = int(min(_VMEM_CAP, max(2 * plan["vmem"], 16 * 1024 * 1024)))
    cost = pl.CostEstimate(
        flops=2 * T_pad * H_pad * H_pad,
        transcendentals=0,
        bytes_accessed=(x2d.size + w.size + b2d.size + T_pad * H_pad) * itemsize,
    )

    if plan["kind"] == "fullk":
        # Grid (j, i): token axis innermost -> each weight strip DMA'd exactly once.
        grid = (H_pad // tn, T_pad // tm)
        out = pl.pallas_call(
            _fc_fullk_kernel,
            out_shape=jax.ShapeDtypeStruct((T_pad, H_pad), dtype),
            grid_spec=pltpu.PrefetchScalarGridSpec(
                num_scalar_prefetch=0,
                grid=grid,
                in_specs=[
                    pl.BlockSpec((tm, H_pad), lambda j, i: (i, 0)),   # x strip
                    pl.BlockSpec((tn, H_pad), lambda j, i: (j, 0)),   # weight strip (out, in)
                    pl.BlockSpec((1, tn), lambda j, i: (0, j)),       # bias
                ],
                out_specs=pl.BlockSpec((tm, tn), lambda j, i: (i, j)),
            ),
            compiler_params=pltpu.CompilerParams(
                dimension_semantics=("parallel", "parallel"),
                vmem_limit_bytes=vmem_limit),
            cost_estimate=cost,
        )(x2d, w, b2d)
    else:
        grid = (T_pad // tm, H_pad // tn, H_pad // tk)
        assert grid[2] >= 2, "streaming path requires at least 2 K steps"
        out = pl.pallas_call(
            _fc_stream_kernel,
            out_shape=jax.ShapeDtypeStruct((T_pad, H_pad), dtype),
            grid_spec=pltpu.PrefetchScalarGridSpec(
                num_scalar_prefetch=0,
                grid=grid,
                in_specs=[
                    pl.BlockSpec((tm, tk), lambda i, j, k: (i, k)),   # x tile
                    pl.BlockSpec((tn, tk), lambda i, j, k: (j, k)),   # weight tile
                    pl.BlockSpec((1, tn), lambda i, j, k: (0, j)),    # bias
                ],
                out_specs=pl.BlockSpec((tm, tn), lambda i, j, k: (i, j)),
                scratch_shapes=[pltpu.VMEM((tm, tn), jnp.float32)],
            ),
            compiler_params=pltpu.CompilerParams(
                dimension_semantics=("parallel", "parallel", "arbitrary"),
                vmem_limit_bytes=vmem_limit),
            cost_estimate=cost,
        )(x2d, w, b2d)

    if T_pad != T or H_pad != H:
        out = out[:T, :H]
    return out.reshape(orig_shape)


if __name__ == "__main__":
    # Shapes consistent with the module: hidden_dim = 32, float32 (double=False),
    # hidden_states of shape [batch=2, seq=8, hidden=32].
    hidden_dim = 32
    batch, seq = 2, 8

    key = jax.random.PRNGKey(0)
    kx, kw, kb = jax.random.split(key, 3)

    x = jax.random.normal(kx, (batch, seq, hidden_dim), dtype=jnp.float32)

    # Deterministic nn.Linear-style init: U(-1/sqrt(H), 1/sqrt(H))
    bound = 1.0 / jnp.sqrt(jnp.float32(hidden_dim))
    weight = jax.random.uniform(kw, (hidden_dim, hidden_dim),
                                minval=-bound, maxval=bound, dtype=jnp.float32)
    bias = jax.random.uniform(kb, (hidden_dim,),
                              minval=-bound, maxval=bound, dtype=jnp.float32)

    out = jax.block_until_ready(fc_hidden_linear(x, weight, bias))
    ref = jnp.maximum(x @ weight.T + bias, 0.0)      # eval-mode dropout = identity
    assert out.shape == x.shape
    assert jnp.allclose(out, ref, atol=1e-5, rtol=1e-5)

    # Self-check of the streaming (K-tiled accumulator) variant at a modest size.
    H2, T2 = 512, 64
    k2x, k2w, k2b = jax.random.split(jax.random.PRNGKey(1), 3)
    x2 = jax.random.normal(k2x, (T2, H2), dtype=jnp.float32)
    bound2 = 1.0 / jnp.sqrt(jnp.float32(H2))
    w2 = jax.random.uniform(k2w, (H2, H2), minval=-bound2, maxval=bound2,
                            dtype=jnp.float32)
    b2 = jax.random.uniform(k2b, (H2,), minval=-bound2, maxval=bound2,
                            dtype=jnp.float32)
    out2 = jax.block_until_ready(fc_hidden_linear(x2, w2, b2, force="stream"))
    ref2 = jnp.maximum(x2 @ w2.T + b2, 0.0)
    assert jnp.allclose(out2, ref2, atol=1e-4, rtol=1e-4)

    print("KERNEL_OK")
</pallas_src>

<mosaic_0001>
module attributes {stable_mosaic.version = 11 : i64} {
  func.func @_fc_fullk_kernel(%arg0: i32, %arg1: i32, %arg2: memref<8x128xf32, #tpu.memory_space<vmem>>, %arg3: memref<128x128xf32, #tpu.memory_space<vmem>>, %arg4: memref<1x128xf32, #tpu.memory_space<vmem>>, %arg5: memref<8x128xf32, #tpu.memory_space<vmem>>) attributes {dimension_semantics = [#tpu.dimension_semantics<parallel>, #tpu.dimension_semantics<parallel>], iteration_bounds = array<i64: 1, 2>, scalar_prefetch = 0 : i64, scratch_operands = 0 : i64, tpu.core_type = #tpu.core_type<tc>, window_params = [{transform_indices = @transform_0, window_bounds = array<i64: 8, 128>}, {transform_indices = @transform_1, window_bounds = array<i64: 128, 128>}, {transform_indices = @transform_2, window_bounds = array<i64: 1, 128>}, {transform_indices = @transform_3, window_bounds = array<i64: 8, 128>}]} {
    %c0 = arith.constant 0 : index
    %c0_0 = arith.constant 0 : index
    %0 = vector.load %arg2[%c0, %c0_0] : memref<8x128xf32, #tpu.memory_space<vmem>>, vector<8x128xf32>
    %c0_1 = arith.constant 0 : index
    %c0_2 = arith.constant 0 : index
    %1 = vector.load %arg3[%c0_1, %c0_2] : memref<128x128xf32, #tpu.memory_space<vmem>>, vector<128x128xf32>
    %cst = arith.constant dense<0.000000e+00> : vector<8x128xf32>
    %2 = tpu.matmul %0, %1, %cst {dimension_numbers = #tpu.dot_dimension_numbers<[1], [1], [0], [0], [0, 0, 1, 0], [], []>} : vector<8x128xf32>, vector<128x128xf32>, vector<8x128xf32> -> vector<8x128xf32>
    %c0_3 = arith.constant 0 : index
    %c0_4 = arith.constant 0 : index
    %3 = vector.load %arg4[%c0_3, %c0_4] : memref<1x128xf32, #tpu.memory_space<vmem>>, vector<1x128xf32>
    %4 = vector.broadcast %3 : vector<1x128xf32> to vector<8x128xf32>
    %5 = arith.addf %2, %4 : vector<8x128xf32>
    %cst_5 = arith.constant 0.000000e+00 : f32
    %6 = vector.broadcast %cst_5 : f32 to vector<8x128xf32>
    %7 = arith.maximumf %5, %6 : vector<8x128xf32>
    %c0_6 = arith.constant 0 : index
    %c0_7 = arith.constant 0 : index
    %8 = vector.load %arg5[%c0_6, %c0_7] : memref<8x128xf32, #tpu.memory_space<vmem>>, vector<8x128xf32>
    tpu.vector_store %arg5[%c0_6, %c0_7], %7 {strides = array<i32>} : memref<8x128xf32, #tpu.memory_space<vmem>>, vector<8x128xf32>,
    return
  }
  func.func @transform_0(%arg0: i32, %arg1: i32) -> (i32, i32) {
    %c0_i32 = arith.constant 0 : i32
    %c0_i32_0 = arith.constant 0 : i32
    return %arg1, %c0_i32 : i32, i32
  }
  func.func @transform_1(%arg0: i32, %arg1: i32) -> (i32, i32) {
    %c0_i32 = arith.constant 0 : i32
    %c0_i32_0 = arith.constant 0 : i32
    return %arg0, %c0_i32 : i32, i32
  }
  func.func @transform_2(%arg0: i32, %arg1: i32) -> (i32, i32) {
    %c0_i32 = arith.constant 0 : i32
    %c0_i32_0 = arith.constant 0 : i32
    return %c0_i32, %arg0 : i32, i32
  }
  func.func @transform_3(%arg0: i32, %arg1: i32) -> (i32, i32) {
    %c0_i32 = arith.constant 0 : i32
    return %arg1, %arg0 : i32, i32
  }
}

</mosaic_0001>

<llo_original>
// kernel: tpu_custom_call.1
$region0: #{tpu_custom_call.1}
  #allocation0 [shape = 'u32[]', space=smem, size = 0x4, offset = 0x4, fixed_abs, tag = 'smem constant byte address 0x4 - core index']
  #allocation1 [shape = 'u32[144,128]{1,0:T(1,128)}', space=vmem, size = 0x12000, scoped, tag = 'internal scratch']
  %s0 = inlined_call_operand.hbm [shape: f32[16,128], index: 0, kind: input, shape index: {}]
  %s1 = inlined_call_operand.hbm [shape: f32[128,128], index: 1, kind: input, shape index: {}]
  %s2 = inlined_call_operand.vmem [shape: f32[1,128], index: 2, kind: input, shape index: {}]
  %s3 = inlined_call_operand.hbm [shape: f32[16,128], index: 3, kind: output, shape index: {}]
  %s4 = sld [smem:[#allocation0]]
  $region53: #{tpu_custom_call.1} parent=0
    _
  %s6 = ssub.s32 1, %s4
  %s7 = scalar_select 0, %s6, %s4
  $region1: #{tpu_custom_call.1} parent=0
    #allocation2 [shape = 'u8[8192]{0}', space=vmem, size = 0x2000, scoped, tag = 'input window, operand 0']
    #allocation3 [shape = 's32[2]{0}', space=sflag, size = 0x8, scoped, tag = 'scoped memory for tpu_custom_call.1']
    #allocation4 [shape = 's32[2]{0}', space=sflag, size = 0x8, scoped, tag = 'scoped memory for tpu_custom_call.1']
    #allocation5 [shape = 'u8[65536]{0}', space=vmem, size = 0x10000, scoped, tag = 'input window, operand 1, single buffered']
    #allocation6 [shape = 's32[1]{0}', space=sflag, size = 0x4, scoped, tag = 'scoped memory for tpu_custom_call.1']
    #allocation7 [shape = 'u8[8192]{0}', space=vmem, size = 0x2000, scoped, tag = 'output window, operand 0']
    %8 = vsyncpa [#allocation3], 0
    %s9 = scalar_lea.sflag [#allocation3], 1
    %10 = vsyncpa %s9, 0
    %11 = vsyncpa [#allocation6], 0
    %12 = vsyncpa [#allocation4], 0
    %s13 = scalar_lea.sflag [#allocation4], 1
    %14 = vsyncpa %s13, 0
    loop: start=0, step=1, limit=4
    $region2: #{tpu_custom_call.1} parent=1 // loop_pre_header
      _
    $region3: #{tpu_custom_call.1} parent=1 // loop_header
      %s16 = sphi 0, %s20
      %p17 = scmp.ge.s32.totalorder %s16, 4
      %s23 = sphi 0, %s35
      %s24 = sphi 0, %s31
      %s25 = sphi 0, %s23
      %s26 = sphi 0, %s24
      %s27 = sphi 0, %s25
      %s28 = sphi 0, %s26
      %s38 = sphi 0, %s40
      %s41 = sphi 0, %s38
      %s42 = sphi 0, %s41
      %s58 = sphi 0, %s42
      %s64 = sphi 0, %s66
      %s67 = sphi 0, %s64
      %s68 = sphi 0, %s67
      %s84 = sphi 0, %s68
      %s90 = sphi 0, %s92
      %s93 = sphi 0, %s90
      %s94 = sphi 0, %s93
      %s110 = sphi 0, %s94
      %s118 = sphi 0, %s120
      %s121 = sphi 0, %s118
      %s122 = sphi 0, %s121
      %s138 = sphi 0, %s122
    $region4: #{tpu_custom_call.1} parent=1 // loop_header_branch
      %19 = sbr.rel (%p17) target = $region8
    $region5: #{tpu_custom_call.1} parent=1 // loop_body
      %s21 = ssub.s32 %s16, 1
      %s22 = ssub.s32 %s16, 2
      %s29 = sadd.s32 1, %s24
      %p30 = scmp.ge.s32.totalorder %s29, 2
      %s31 = scalar_select %p30, 0, %s29
      %s32 = sadd.s32 1, %s23
      %s33 = scalar_select %p30, %s32, %s23
      %p34 = scmp.ge.s32.totalorder %s33, 1
      %s35 = scalar_select %p34, 0, %s33
      %s36 = ssub.s32 %s24, %s31
      %p37 = scmp.eq.s32.totalorder %s36, 0
      %s39 = sadd.s32 %s38, 1
      %s40 = scalar_select %p37, %s38, %s39
      %p43 = pneg %p37
      %p44 = scmp.eq.s32.totalorder %s16, 1
      %p45 = por %p43, %p44
      %p46 = scmp.ne.s32.totalorder %s38, %s41
      %p47 = scmp.eq.s32.totalorder %s16, 0
      %p48 = por %p46, %p47
      %p49 = scmp.ne.s32.totalorder %s38, %s41
      %p50 = scmp.eq.s32.totalorder %s21, 1
      %p51 = por %p49, %p50
      %p52 = scmp.ne.s32.totalorder %s41, %s42
      %p53 = scmp.eq.s32.totalorder %s21, 0
      %p54 = por %p52, %p53
      %p55 = scmp.ne.s32.totalorder %s41, %s42
      %p56 = scmp.eq.s32.totalorder %s22, 1
      %p57 = por %p55, %p56
      %p59 = scmp.ne.s32.totalorder %s42, %s58
      %p60 = scmp.eq.s32.totalorder %s22, 0
      %p61 = por %p59, %p60
      %s62 = ssub.s32 %s23, %s35
      %p63 = scmp.eq.s32.totalorder %s62, 0
      %s65 = sadd.s32 %s64, 1
      %s66 = scalar_select %p63, %s64, %s65
      %p69 = pneg %p63
      %p70 = scmp.eq.s32.totalorder %s16, 1
      %p71 = por %p69, %p70
      %p72 = scmp.ne.s32.totalorder %s64, %s67
      %p73 = scmp.eq.s32.totalorder %s16, 0
      %p74 = por %p72, %p73
      %p75 = scmp.ne.s32.totalorder %s64, %s67
      %p76 = scmp.eq.s32.totalorder %s21, 1
      %p77 = por %p75, %p76
      %p78 = scmp.ne.s32.totalorder %s67, %s68
      %p79 = scmp.eq.s32.totalorder %s21, 0
      %p80 = por %p78, %p79
      %p81 = scmp.ne.s32.totalorder %s67, %s68
      %p82 = scmp.eq.s32.totalorder %s22, 1
      %p83 = por %p81, %p82
      %p85 = scmp.ne.s32.totalorder %s68, %s84
      %p86 = scmp.eq.s32.totalorder %s22, 0
      %p87 = por %p85, %p86
      %s88 = ssub.s32 %s23, %s35
      %p89 = scmp.eq.s32.totalorder %s88, 0
      %s91 = sadd.s32 %s90, 1
      %s92 = scalar_select %p89, %s90, %s91
      %p95 = pneg %p89
      %p96 = scmp.eq.s32.totalorder %s16, 1
      %p97 = por %p95, %p96
      %p98 = scmp.ne.s32.totalorder %s90, %s93
      %p99 = scmp.eq.s32.totalorder %s16, 0
      %p100 = por %p98, %p99
      %p101 = scmp.ne.s32.totalorder %s90, %s93
      %p102 = scmp.eq.s32.totalorder %s21, 1
      %p103 = por %p101, %p102
      %p104 = scmp.ne.s32.totalorder %s93, %s94
      %p105 = scmp.eq.s32.totalorder %s21, 0
      %p106 = por %p104, %p105
      %p107 = scmp.ne.s32.totalorder %s93, %s94
      %p108 = scmp.eq.s32.totalorder %s22, 1
      %p109 = por %p107, %p108
      %p111 = scmp.ne.s32.totalorder %s94, %s110
      %p112 = scmp.eq.s32.totalorder %s22, 0
      %p113 = por %p111, %p112
      %s114 = ssub.s32 %s24, %s31
      %s115 = ssub.s32 %s23, %s35
      %s116 = sor.u32 %s114, %s115
      %p117 = scmp.eq.s32.totalorder %s116, 0
      %s119 = sadd.s32 %s118, 1
      %s120 = scalar_select %p117, %s118, %s119
      %p123 = pneg %p117
      %p124 = scmp.eq.s32.totalorder %s16, 1
      %p125 = por %p123, %p124
      %p126 = scmp.ne.s32.totalorder %s118, %s121
      %p127 = scmp.eq.s32.totalorder %s16, 0
      %p128 = por %p126, %p127
      %p129 = scmp.ne.s32.totalorder %s118, %s121
      %p130 = scmp.eq.s32.totalorder %s21, 1
      %p131 = por %p129, %p130
      %p132 = scmp.ne.s32.totalorder %s121, %s122
      %p133 = scmp.eq.s32.totalorder %s21, 0
      %p134 = por %p132, %p133
      %p135 = scmp.ne.s32.totalorder %s121, %s122
      %p136 = scmp.eq.s32.totalorder %s22, 1
      %p137 = por %p135, %p136
      %p139 = scmp.ne.s32.totalorder %s122, %s138
      %p140 = scmp.eq.s32.totalorder %s22, 0
      %p141 = por %p139, %p140
      %p142 = scmp.le.s32.totalorder 1, %s16
      %p143 = scmp.lt.s32.totalorder %s16, 3
      %p144 = pnand %p142, %p143
      %p145 = pneg %p144
      // Predicated region
      $region9: #{tpu_custom_call.1} parent=5 // pred_check
        _
      $region10: #{tpu_custom_call.1} parent=5 // pred_check_branch
        %147 = sbr.rel (%p144) target = $region12
      $region11: #{tpu_custom_call.1} parent=5 // pred_region
        %s148 = ssub.s32 %s16, 1
        // Predicated region
        $region13: #{tpu_custom_call.1} parent=11 // pred_check
          %p149 = pneg %p80
        $region14: #{tpu_custom_call.1} parent=11 // pred_check_branch
          %151 = sbr.rel (%p149) target = $region16
        $region15: #{tpu_custom_call.1} parent=11 // pred_region
          %s152 = smul.u32 16, %s25
          %s154 = ssub.s32 2048, 2048
          %155 = vsyncadd [#allocation6], %s154
          %s156 = smul.addr %s152, 128
          %s157 = scalar_lea.hbm %s1, %s156
          %s158 = sshll.u32 [#allocation5], 4
          %s159 = int_to_ptr.vmem [resolvable:$true] %s158
          %164 = dma.hbm_to_vmem [thread:$0]  %s157, 2048, %s159, [#allocation6], 128, 128, 8
        $region16: #{tpu_custom_call.1} parent=11 // pred_fallthru
          _
        // Predicated region
        $region17: #{tpu_custom_call.1} parent=11 // pred_check
          %p165 = pneg %p106
        $region18: #{tpu_custom_call.1} parent=11 // pred_check_branch
          %167 = sbr.rel (%p165) target = $region20
        $region19: #{tpu_custom_call.1} parent=11 // pred_region
          %p168 = scmp.lt.s32.totalorder %s25, 0
          %s169 = scalar_select %p168, %s25, 0
          %s170 = scalar_lea.vmem %s2, %s169
        $region20: #{tpu_custom_call.1} parent=11 // pred_fallthru
          _
      $region12: #{tpu_custom_call.1} parent=5 // pred_fallthru
        _
      %p171 = scmp.lt.s32.totalorder %s16, 2
      // Predicated region
      $region21: #{tpu_custom_call.1} parent=5 // pred_check
        %p172 = pneg %p171
      $region22: #{tpu_custom_call.1} parent=5 // pred_check_branch
        %174 = sbr.rel (%p172) target = $region24
      $region23: #{tpu_custom_call.1} parent=5 // pred_region
        // Predicated region
        $region25: #{tpu_custom_call.1} parent=23 // pred_check
          %p175 = pneg %p48
        $region26: #{tpu_custom_call.1} parent=23 // pred_check_branch
          %177 = sbr.rel (%p175) target = $region28
        $region27: #{tpu_custom_call.1} parent=23 // pred_region
          %s178 = sand.u32 %s38, 1
          %s179 = scalar_lea.sflag [#allocation3], %s178
          %s180 = sand.u32 %s38, 1
          %s181 = smul.addr %s180, 8
          %s182 = scalar_lea.vmem [#allocation2], %s181
          %s184 = ssub.s32 128, 128
          %185 = vsyncadd %s179, %s184
          %s186 = smul.addr %s24, 128
          %s187 = scalar_lea.hbm %s0, %s186
          %s189 = sshll.u32 %s182, 4
          %s190 = int_to_ptr.vmem [resolvable:$true] %s189
          %192 = dma.hbm_to_vmem [thread:$0]  %s187, 128, %s190, %s179
        $region28: #{tpu_custom_call.1} parent=23 // pred_fallthru
          _
      $region24: #{tpu_custom_call.1} parent=5 // pred_fallthru
        _
      %p193 = scmp.le.s32.totalorder 1, %s16
      %p194 = scmp.lt.s32.totalorder %s16, 3
      %p195 = pnand %p193, %p194
      %p196 = pneg %p195
      // Predicated region
      $region29: #{tpu_custom_call.1} parent=5 // pred_check
        _
      $region30: #{tpu_custom_call.1} parent=5 // pred_check_branch
        %198 = sbr.rel (%p195) target = $region32
      $region31: #{tpu_custom_call.1} parent=5 // pred_region
        %s199 = ssub.s32 %s16, 1
        %s200 = sand.u32 %s41, 1
        %s201 = scalar_lea.sflag [#allocation3], %s200
        %s202 = sand.u32 %s41, 1
        %s203 = smul.addr %s202, 8
        %s204 = scalar_lea.vmem [#allocation2], %s203
        // Predicated region
        $region33: #{tpu_custom_call.1} parent=31 // pred_check
          %p205 = pneg %p54
        $region34: #{tpu_custom_call.1} parent=31 // pred_check_branch
          %207 = sbr.rel (%p205) target = $region36
        $region35: #{tpu_custom_call.1} parent=31 // pred_region
          %208 = dma.done %s201, 128
        $region36: #{tpu_custom_call.1} parent=31 // pred_fallthru
          _
        // Predicated region
        $region37: #{tpu_custom_call.1} parent=31 // pred_check
          %p209 = pneg %p80
        $region38: #{tpu_custom_call.1} parent=31 // pred_check_branch
          %211 = sbr.rel (%p209) target = $region40
        $region39: #{tpu_custom_call.1} parent=31 // pred_region
          %212 = dma.done [#allocation6], 2048
        $region40: #{tpu_custom_call.1} parent=31 // pred_fallthru
          _
        %s213 = sand.u32 %s41, 1
        %s214 = scalar_lea.sflag [#allocation3], %s213
        %s215 = sand.u32 %s41, 1
        %s216 = smul.addr %s215, 8
        %s217 = scalar_lea.vmem [#allocation2], %s216
        %p218 = pneg %p54
        %p219 = pneg %p51
        %p220 = pneg %p80
        %p221 = pneg %p77
        %p222 = scmp.lt.s32.totalorder %s25, 0
        %s223 = scalar_select %p222, %s25, 0
        %s224 = scalar_lea.vmem %s2, %s223
        %p225 = pneg %p106
        %p226 = pneg %p103
        %p227 = pneg %p134
        %p228 = pneg %p131
        %s229 = sand.u32 %s121, 1
        %s230 = scalar_lea.sflag [#allocation4], %s229
        %s231 = sand.u32 %s121, 1
        %s232 = smul.addr %s231, 8
        %s233 = scalar_lea.vmem [#allocation7], %s232
        %s234 = smul.u32 16, %s25
        %p235 = scmp.lt.s32.totalorder %s25, 0
        %s236 = scalar_select %p235, %s25, 0
        %s237 = scalar_lea.vmem %s2, %s236
        %v238 = vld [vmem:[%s204] sm:$0xff]
        %v239 = vld [vmem:[#allocation5] sm:$0xff]
        %v240 = vld [vmem:[#allocation5 + $0x8] sm:$0xff]
        %v241 = vld [vmem:[#allocation5 + $0x10] sm:$0xff]
        %v242 = vld [vmem:[#allocation5 + $0x18] sm:$0xff]
        %v243 = vld [vmem:[#allocation5 + $0x20] sm:$0xff]
        %v244 = vld [vmem:[#allocation5 + $0x28] sm:$0xff]
        %v245 = vld [vmem:[#allocation5 + $0x30] sm:$0xff]
        %v246 = vld [vmem:[#allocation5 + $0x38] sm:$0xff]
        %v247 = vld [vmem:[#allocation5 + $0x40] sm:$0xff]
        %v248 = vld [vmem:[#allocation5 + $0x48] sm:$0xff]
        %v249 = vld [vmem:[#allocation5 + $0x50] sm:$0xff]
        %v250 = vld [vmem:[#allocation5 + $0x58] sm:$0xff]
        %v251 = vld [vmem:[#allocation5 + $0x60] sm:$0xff]
        %v252 = vld [vmem:[#allocation5 + $0x68] sm:$0xff]
        %v253 = vld [vmem:[#allocation5 + $0x70] sm:$0xff]
        %v254 = vld [vmem:[#allocation5 + $0x78] sm:$0xff]
        %v255 = vld [vmem:[%s237] sm:$0x1]
        %v257 = vlaneseq
        %v258 = vshrl.u32 %v257, 7
        %v259 = vsub.s32 0, %v258
        %v260 = vrot.slane %v255, %v259
        %262 = vmatprep.subr.mxu0 0.0
        %263 = vmatpush1.xpose.msra.mxu0 %v239
        %264 = vmatprep.subr.mxu0 0.0
        %265 = vmatpush1.xpose.msra.mxu0 %v240
        %266 = vmatprep.subr.mxu0 0.0
        %267 = vmatpush1.xpose.msra.mxu0 %v241
        %268 = vmatprep.subr.mxu0 0.0
        %269 = vmatpush1.xpose.msra.mxu0 %v242
        %270 = vmatprep.subr.mxu0 0.0
        %271 = vmatpush1.xpose.msra.mxu0 %v243
        %272 = vmatprep.subr.mxu0 0.0
        %273 = vmatpush1.xpose.msra.mxu0 %v244
        %274 = vmatprep.subr.mxu0 0.0
        %275 = vmatpush1.xpose.msra.mxu0 %v245
        %276 = vmatprep.subr.mxu0 0.0
        %277 = vmatpush1.xpose.msra.mxu0 %v246
        %278 = vmatprep.subr.mxu0 0.0
        %279 = vmatpush1.xpose.msra.mxu0 %v247
        %280 = vmatprep.subr.mxu0 0.0
        %281 = vmatpush1.xpose.msra.mxu0 %v248
        %282 = vmatprep.subr.mxu0 0.0
        %283 = vmatpush1.xpose.msra.mxu0 %v249
        %284 = vmatprep.subr.mxu0 0.0
        %285 = vmatpush1.xpose.msra.mxu0 %v250
        %286 = vmatprep.subr.mxu0 0.0
        %287 = vmatpush1.xpose.msra.mxu0 %v251
        %288 = vmatprep.subr.mxu0 0.0
        %289 = vmatpush1.xpose.msra.mxu0 %v252
        %290 = vmatprep.subr.mxu0 0.0
        %291 = vmatpush1.xpose.msra.mxu0 %v253
        %292 = vmatprep.subr.mxu0 0.0
        %293 = vmatpush1.xpose.msra.mxu0 %v254
        %294 = vmatprep.subr.mxu0 0.0
        %295 = vmatpush1.xpose.msra.mxu0 0.0
        %296 = vmatprep.subr.mxu0 0.0
        %297 = vmatpush1.xpose.msra.mxu0 0.0
        %298 = vmatprep.subr.mxu0 0.0
        %299 = vmatpush1.xpose.msra.mxu0 0.0
        %300 = vmatprep.subr.mxu0 0.0
        %301 = vmatpush1.xpose.msra.mxu0 0.0
        %302 = vmatprep.subr.mxu0 0.0
        %303 = vmatpush1.xpose.msra.mxu0 0.0
        %304 = vmatprep.subr.mxu0 0.0
        %305 = vmatpush1.xpose.msra.mxu0 0.0
        %306 = vmatprep.subr.mxu0 0.0
        %307 = vmatpush1.xpose.msra.mxu0 0.0
        %308 = vmatprep.subr.mxu0 0.0
        %309 = vmatpush1.xpose.msra.mxu0 0.0
        %310 = vmatprep.subr.mxu0 0.0
        %311 = vmatpush1.xpose.msra.mxu0 0.0
        %312 = vmatprep.subr.mxu0 0.0
        %313 = vmatpush1.xpose.msra.mxu0 0.0
        %314 = vmatprep.subr.mxu0 0.0
        %315 = vmatpush1.xpose.msra.mxu0 0.0
        %316 = vmatprep.subr.mxu0 0.0
        %317 = vmatpush1.xpose.msra.mxu0 0.0
        %318 = vmatprep.subr.mxu0 0.0
        %319 = vmatpush1.xpose.msra.mxu0 0.0
        %320 = vmatprep.subr.mxu0 0.0
        %321 = vmatpush1.xpose.msra.mxu0 0.0
        %322 = vmatprep.subr.mxu0 0.0
        %323 = vmatpush1.xpose.msra.mxu0 0.0
        %324 = vmatprep.subr.mxu0 0.0
        %325 = vmatpush1.xpose.msra.mxu0 0.0
        %326 = vmatprep.mubr.f32.mxu0 0.0
        %327 = vmatmul.mubr.f32.gmra.mrb[0].mxu0 %v238
        %v328 = vpop.f32.mrb[0].mxu0
        %v329 = vadd.f32 %v260, %v328
        %v330 = vpop.f32.mrb[0].mxu0
        %331 = vdwg.mxu0
        %v332 = vmax.f32 %v329, 0.0
        %333 = vst [vmem:[%s233] sm:$0xff] %v332
        %s334 = sand.u32 %s121, 1
        %s335 = scalar_lea.sflag [#allocation4], %s334
        %s336 = sand.u32 %s121, 1
        %s337 = smul.addr %s336, 8
        %s338 = scalar_lea.vmem [#allocation7], %s337
        // Predicated region
        $region41: #{tpu_custom_call.1} parent=31 // pred_check
          %p339 = pneg %p131
        $region42: #{tpu_custom_call.1} parent=31 // pred_check_branch
          %341 = sbr.rel (%p339) target = $region44
        $region43: #{tpu_custom_call.1} parent=31 // pred_region
          %s343 = ssub.s32 128, 128
          %344 = vsyncadd %s335, %s343
          %s345 = sadd.s32 %s25, %s26
          %s346 = smul.addr %s345, 128
          %s347 = scalar_lea.hbm %s3, %s346
          %s349 = sshll.u32 %s338, 4
          %s350 = int_to_ptr.vmem [resolvable:$true] %s349
          %352 = dma.vmem_to_hbm [thread:$0]  %s350, 128, %s347, %s335
        $region44: #{tpu_custom_call.1} parent=31 // pred_fallthru
          _
      $region32: #{tpu_custom_call.1} parent=5 // pred_fallthru
        _
      %p353 = scmp.le.s32.totalorder 2, %s16
      // Predicated region
      $region45: #{tpu_custom_call.1} parent=5 // pred_check
        %p354 = pneg %p353
      $region46: #{tpu_custom_call.1} parent=5 // pred_check_branch
        %356 = sbr.rel (%p354) target = $region48
      $region47: #{tpu_custom_call.1} parent=5 // pred_region
        %s357 = ssub.s32 %s16, 2
        // Predicated region
        $region49: #{tpu_custom_call.1} parent=47 // pred_check
          %p358 = pneg %p137
        $region50: #{tpu_custom_call.1} parent=47 // pred_check_branch
          %360 = sbr.rel (%p358) target = $region52
        $region51: #{tpu_custom_call.1} parent=47 // pred_region
          %s361 = sand.u32 %s122, 1
          %s362 = scalar_lea.sflag [#allocation4], %s361
          %s363 = sand.u32 %s122, 1
          %s364 = smul.addr %s363, 8
          %s365 = scalar_lea.vmem [#allocation7], %s364
          %366 = dma.done %s362, 128
        $region52: #{tpu_custom_call.1} parent=47 // pred_fallthru
          _
      $region48: #{tpu_custom_call.1} parent=5 // pred_fallthru
        _
    $region6: #{tpu_custom_call.1} parent=1 // loop_footer
      %s20 = sadd.s32 1, %s16
    $region7: #{tpu_custom_call.1} parent=1 // loop_footer_branch
      %15 = sbr.rel target = $region3
    $region8: #{tpu_custom_call.1} parent=1 // loop_exit
      _
    %367 = vsyncpa [#allocation3], 1
    %s368 = scalar_lea.sflag [#allocation3], 1
    %369 = vsyncpa %s368, 1
    %370 = vsyncpa [#allocation6], 1
    %371 = vsyncpa [#allocation4], 1
    %s372 = scalar_lea.sflag [#allocation4], 1
    %373 = vsyncpa %s372, 1

</llo_original>
